<compile_context>
chip_gen: v6e
topology: v6e:2x2x1
jax: 0.10.0
libtpu: 0.0.40
codegen_flags: <defaults>
</compile_context>

<pallas_src>
import functools

import jax
import jax.numpy as jnp
from jax.experimental import pallas as pl
from jax.experimental.pallas import tpu as pltpu


def lstm_fc_kernel(x2d_ref, wih_ref, whh_ref, b_ref, fcw_ref, fcb_ref,
                   out_ref, precomp_ref, *, T, Bp):
    H4 = wih_ref.shape[1]
    H = H4 // 4

    # --- one-shot input projection for the whole sequence (off the recurrence) ---
    # (T*Bp, I) @ (I, 4H) + bias -> (T*Bp, 4H), stored once to VMEM scratch.
    precomp_ref[...] = (
        jnp.dot(x2d_ref[...], wih_ref[...], preferred_element_type=jnp.float32)
        + b_ref[...])                                     # (1,4H) broadcasts once

    # Loop-invariant weight load.
    whh = whh_ref[...]                                    # (H, 4H)

    # Loop-invariant per-lane vectors for the single-tanh gate trick.
    # PyTorch gate order along 4H: i, f, g, o.  sigmoid lanes: i/f/o; tanh lanes: g.
    lane = jax.lax.broadcasted_iota(jnp.int32, (Bp, H4), 1)
    is_g = jnp.logical_and(lane >= 2 * H, lane < 3 * H)
    scale = jnp.where(is_g, 1.0, 0.5).astype(jnp.float32)    # pre- and post-scale
    offset = jnp.where(is_g, 0.0, 0.5).astype(jnp.float32)   # post-offset

    def step(t, carry):
        h, c = carry
        row = pl.multiple_of(t * Bp, 8)
        pre = precomp_ref[pl.ds(row, Bp), :]              # (Bp, 4H) full-vreg load
        gates = pre + jnp.dot(h, whh, preferred_element_type=jnp.float32)
        # One full-vreg EUP op covers all four gates:
        #   sigmoid(x) = 0.5*tanh(0.5*x)+0.5 on i/f/o lanes, tanh(x) on g lanes.
        tg = jnp.tanh(gates * scale)
        act = tg * scale + offset
        i_g = act[:, 0 * H:1 * H]
        f_g = act[:, 1 * H:2 * H]
        g_g = act[:, 2 * H:3 * H]
        o_g = act[:, 3 * H:4 * H]
        c_new = f_g * c + i_g * g_g
        h_new = o_g * jnp.tanh(c_new)
        return (h_new, c_new)

    h0 = jnp.zeros((Bp, H), jnp.float32)
    c0 = jnp.zeros((Bp, H), jnp.float32)
    # Fully unroll only short sequences; larger T keeps a real loop so the live
    # set (matmul + activations per step) stays inside the 64-vreg file.
    h, _ = jax.lax.fori_loop(0, T, step, (h0, c0), unroll=(T <= 16))

    # Final FC on the last hidden state.  O=16 is a single tiny store; pad O to a
    # 128-lane multiple in the wrapper before scaling this up / adding a grid.
    out_ref[...] = (jnp.dot(h, fcw_ref[...], preferred_element_type=jnp.float32)
                    + fcb_ref[...]).astype(out_ref.dtype)


def lstm_rnn_forward(x, w_ih, w_hh, b_ih, b_hh, fc_w, fc_b):
    """x: (T, B, I) float32. Returns (B, O) float32.

    w_ih: (4H, I), w_hh: (4H, H), b_ih/b_hh: (4H,), fc_w: (O, H), fc_b: (O,)
    (same parameter shapes as torch nn.LSTM / nn.Linear).
    """
    T, B, I = x.shape
    H4 = w_ih.shape[0]
    H = H4 // 4
    O = fc_w.shape[0]

    # --- wrapper-side layout plumbing (plain JAX, outside the kernel) ---
    # Pad batch to a full 8-sublane multiple; flatten to a contiguous 2-D slab so
    # the in-kernel input projection is a single lane/sublane-dense matmul.
    Bp = ((B + 7) // 8) * 8
    x_p = jnp.pad(x, ((0, 0), (0, Bp - B), (0, 0))) if Bp != B else x
    x2d = x_p.reshape(T * Bp, I)

    # Fused, transposed weights: gates = x @ (I,4H) + h @ (H,4H) + b
    wih_t = w_ih.T                              # (I, 4H)  gate order i,f,g,o
    whh_t = w_hh.T                              # (H, 4H)
    b = (b_ih + b_hh).reshape(1, H4)            # (1, 4H)
    fcw_t = fc_w.T                              # (H, O)
    fcb = fc_b.reshape(1, O)                    # (1, O)

    kernel = functools.partial(lstm_fc_kernel, T=T, Bp=Bp)
    out_p = pl.pallas_call(
        kernel,
        out_shape=jax.ShapeDtypeStruct((Bp, O), jnp.float32),
        in_specs=[pl.BlockSpec(memory_space=pltpu.MemorySpace.VMEM)] * 6,
        out_specs=pl.BlockSpec(memory_space=pltpu.MemorySpace.VMEM),
        scratch_shapes=[pltpu.VMEM((T * Bp, H4), jnp.float32)],
    )(x2d, wih_t, whh_t, b, fcw_t, fcb)

    return out_p[:B]


def lstm_rnn_reference(x, w_ih, w_hh, b_ih, b_hh, fc_w, fc_b):
    """Pure-JAX reference matching torch semantics."""
    T, B, I = x.shape
    H = w_hh.shape[1]
    h = jnp.zeros((B, H), jnp.float32)
    c = jnp.zeros((B, H), jnp.float32)

    def step(carry, x_t):
        h, c = carry
        gates = x_t @ w_ih.T + b_ih + h @ w_hh.T + b_hh    # (B, 4H)
        i_g = jax.nn.sigmoid(gates[:, 0 * H:1 * H])
        f_g = jax.nn.sigmoid(gates[:, 1 * H:2 * H])
        g_g = jnp.tanh(gates[:, 2 * H:3 * H])
        o_g = jax.nn.sigmoid(gates[:, 3 * H:4 * H])
        c_new = f_g * c + i_g * g_g
        h_new = o_g * jnp.tanh(c_new)
        return (h_new, c_new), None

    (h, c), _ = jax.lax.scan(step, (h, c), x)
    return h @ fc_w.T + fc_b


if __name__ == "__main__":
    T, B = 8, 2
    input_size, hidden_size, output_size = 8, 32, 16

    key = jax.random.PRNGKey(0)
    ks = jax.random.split(key, 7)
    bound = 1.0 / jnp.sqrt(hidden_size)

    x = jax.random.normal(ks[0], (T, B, input_size), jnp.float32)
    w_ih = jax.random.uniform(ks[1], (4 * hidden_size, input_size),
                              jnp.float32, -bound, bound)
    w_hh = jax.random.uniform(ks[2], (4 * hidden_size, hidden_size),
                              jnp.float32, -bound, bound)
    b_ih = jax.random.uniform(ks[3], (4 * hidden_size,), jnp.float32, -bound, bound)
    b_hh = jax.random.uniform(ks[4], (4 * hidden_size,), jnp.float32, -bound, bound)
    fc_w = jax.random.uniform(ks[5], (output_size, hidden_size),
                              jnp.float32, -bound, bound)
    fc_b = jax.random.uniform(ks[6], (output_size,), jnp.float32, -bound, bound)

    out = lstm_rnn_forward(x, w_ih, w_hh, b_ih, b_hh, fc_w, fc_b)
    out = jax.block_until_ready(out)

    ref = lstm_rnn_reference(x, w_ih, w_hh, b_ih, b_hh, fc_w, fc_b)
    assert out.shape == (B, output_size)
    # Slightly loosened vs exact-sigmoid path: the sigmoid-via-tanh identity is
    # mathematically exact but changes the fp op sequence by ~1 ulp per gate.
    assert jnp.allclose(out, ref, atol=3e-5, rtol=3e-5), (out, ref)

    print("KERNEL_OK")
</pallas_src>

<mosaic_0001>
module attributes {stable_mosaic.version = 11 : i64} {
  func.func @lstm_fc_kernel(%arg0: memref<64x8xf32, #tpu.memory_space<vmem>>, %arg1: memref<8x128xf32, #tpu.memory_space<vmem>>, %arg2: memref<32x128xf32, #tpu.memory_space<vmem>>, %arg3: memref<1x128xf32, #tpu.memory_space<vmem>>, %arg4: memref<32x16xf32, #tpu.memory_space<vmem>>, %arg5: memref<1x16xf32, #tpu.memory_space<vmem>>, %arg6: memref<8x16xf32, #tpu.memory_space<vmem>>, %arg7: memref<64x128xf32, #tpu.memory_space<vmem>>) attributes {dimension_semantics = [], scalar_prefetch = 0 : i64, scratch_operands = 1 : i64, tpu.core_type = #tpu.core_type<tc>} {
    %c0 = arith.constant 0 : index
    %c0_0 = arith.constant 0 : index
    %0 = vector.load %arg0[%c0, %c0_0] : memref<64x8xf32, #tpu.memory_space<vmem>>, vector<64x8xf32>
    %c0_1 = arith.constant 0 : index
    %c0_2 = arith.constant 0 : index
    %1 = vector.load %arg1[%c0_1, %c0_2] : memref<8x128xf32, #tpu.memory_space<vmem>>, vector<8x128xf32>
    %cst = arith.constant dense<0.000000e+00> : vector<64x128xf32>
    %2 = tpu.matmul %0, %1, %cst {dimension_numbers = #tpu.dot_dimension_numbers<[1], [0], [0], [1], [0, 0, 1, 1], [], []>} : vector<64x8xf32>, vector<8x128xf32>, vector<64x128xf32> -> vector<64x128xf32>
    %c0_3 = arith.constant 0 : index
    %c0_4 = arith.constant 0 : index
    %3 = vector.load %arg3[%c0_3, %c0_4] : memref<1x128xf32, #tpu.memory_space<vmem>>, vector<1x128xf32>
    %4 = vector.broadcast %3 : vector<1x128xf32> to vector<64x128xf32>
    %5 = arith.addf %2, %4 : vector<64x128xf32>
    %c0_5 = arith.constant 0 : index
    %c0_6 = arith.constant 0 : index
    %6 = vector.load %arg7[%c0_5, %c0_6] : memref<64x128xf32, #tpu.memory_space<vmem>>, vector<64x128xf32>
    tpu.vector_store %arg7[%c0_5, %c0_6], %5 {strides = array<i32>} : memref<64x128xf32, #tpu.memory_space<vmem>>, vector<64x128xf32>,
    %c0_7 = arith.constant 0 : index
    %c0_8 = arith.constant 0 : index
    %7 = vector.load %arg2[%c0_7, %c0_8] : memref<32x128xf32, #tpu.memory_space<vmem>>, vector<32x128xf32>
    %8 = tpu.iota {dimensions = array<i32: 1>} : vector<8x128xi32>
    %c64_i32 = arith.constant 64 : i32
    %9 = vector.broadcast %c64_i32 : i32 to vector<8x128xi32>
    %10 = arith.cmpi sge, %8, %9 : vector<8x128xi32>
    %c96_i32 = arith.constant 96 : i32
    %11 = vector.broadcast %c96_i32 : i32 to vector<8x128xi32>
    %12 = arith.cmpi slt, %8, %11 : vector<8x128xi32>
    %13 = arith.andi %10, %12 : vector<8x128xi1>
    %cst_9 = arith.constant 1.000000e+00 : f32
    %cst_10 = arith.constant 5.000000e-01 : f32
    %14 = vector.broadcast %cst_9 : f32 to vector<8x128xf32>
    %15 = vector.broadcast %cst_10 : f32 to vector<8x128xf32>
    %16 = arith.select %13, %14, %15 : vector<8x128xi1>, vector<8x128xf32>
    %cst_11 = arith.constant 0.000000e+00 : f32
    %cst_12 = arith.constant 5.000000e-01 : f32
    %17 = vector.broadcast %cst_11 : f32 to vector<8x128xf32>
    %18 = vector.broadcast %cst_12 : f32 to vector<8x128xf32>
    %19 = arith.select %13, %17, %18 : vector<8x128xi1>, vector<8x128xf32>
    %cst_13 = arith.constant 0.000000e+00 : f32
    %20 = vector.broadcast %cst_13 : f32 to vector<8x32xf32>
    %cst_14 = arith.constant 0.000000e+00 : f32
    %21 = vector.broadcast %cst_14 : f32 to vector<8x32xf32>
    %c0_i32 = arith.constant 0 : i32
    %c8_i32 = arith.constant 8 : i32
    %22 = arith.muli %c0_i32, %c8_i32 : i32
    %23 = tpu.assume_multiple %22, 8 : i32
    %24 = arith.index_cast %23 : i32 to index
    %c0_15 = arith.constant 0 : index
    %25 = vector.load %arg7[%24, %c0_15] : memref<64x128xf32, #tpu.memory_space<vmem>>, vector<8x128xf32>
    %cst_16 = arith.constant dense<0.000000e+00> : vector<8x128xf32>
    %26 = tpu.matmul %20, %7, %cst_16 {dimension_numbers = #tpu.dot_dimension_numbers<[1], [0], [0], [1], [0, 0, 1, 1], [], []>} : vector<8x32xf32>, vector<32x128xf32>, vector<8x128xf32> -> vector<8x128xf32>
    %27 = arith.addf %25, %26 : vector<8x128xf32>
    %28 = arith.mulf %27, %16 : vector<8x128xf32>
    %29 = math.tanh %28 : vector<8x128xf32>
    %30 = arith.mulf %29, %16 : vector<8x128xf32>
    %31 = arith.addf %30, %19 : vector<8x128xf32>
    %32 = vector.extract_strided_slice %31 {offsets = [0, 0], sizes = [8, 32], strides = [1, 1]} : vector<8x128xf32> to vector<8x32xf32>
    %33 = vector.extract_strided_slice %31 {offsets = [0, 32], sizes = [8, 32], strides = [1, 1]} : vector<8x128xf32> to vector<8x32xf32>
    %34 = vector.extract_strided_slice %31 {offsets = [0, 64], sizes = [8, 32], strides = [1, 1]} : vector<8x128xf32> to vector<8x32xf32>
    %35 = vector.extract_strided_slice %31 {offsets = [0, 96], sizes = [8, 32], strides = [1, 1]} : vector<8x128xf32> to vector<8x32xf32>
    %36 = arith.mulf %33, %21 : vector<8x32xf32>
    %37 = arith.mulf %32, %34 : vector<8x32xf32>
    %38 = arith.addf %36, %37 : vector<8x32xf32>
    %39 = math.tanh %38 : vector<8x32xf32>
    %40 = arith.mulf %35, %39 : vector<8x32xf32>
    %c1_i32 = arith.constant 1 : i32
    %c8_i32_17 = arith.constant 8 : i32
    %41 = arith.muli %c1_i32, %c8_i32_17 : i32
    %42 = tpu.assume_multiple %41, 8 : i32
    %43 = arith.index_cast %42 : i32 to index
    %c0_18 = arith.constant 0 : index
    %44 = vector.load %arg7[%43, %c0_18] : memref<64x128xf32, #tpu.memory_space<vmem>>, vector<8x128xf32>
    %cst_19 = arith.constant dense<0.000000e+00> : vector<8x128xf32>
    %45 = tpu.matmul %40, %7, %cst_19 {dimension_numbers = #tpu.dot_dimension_numbers<[1], [0], [0], [1], [0, 0, 1, 1], [], []>} : vector<8x32xf32>, vector<32x128xf32>, vector<8x128xf32> -> vector<8x128xf32>
    %46 = arith.addf %44, %45 : vector<8x128xf32>
    %47 = arith.mulf %46, %16 : vector<8x128xf32>
    %48 = math.tanh %47 : vector<8x128xf32>
    %49 = arith.mulf %48, %16 : vector<8x128xf32>
    %50 = arith.addf %49, %19 : vector<8x128xf32>
    %51 = vector.extract_strided_slice %50 {offsets = [0, 0], sizes = [8, 32], strides = [1, 1]} : vector<8x128xf32> to vector<8x32xf32>
    %52 = vector.extract_strided_slice %50 {offsets = [0, 32], sizes = [8, 32], strides = [1, 1]} : vector<8x128xf32> to vector<8x32xf32>
    %53 = vector.extract_strided_slice %50 {offsets = [0, 64], sizes = [8, 32], strides = [1, 1]} : vector<8x128xf32> to vector<8x32xf32>
    %54 = vector.extract_strided_slice %50 {offsets = [0, 96], sizes = [8, 32], strides = [1, 1]} : vector<8x128xf32> to vector<8x32xf32>
    %55 = arith.mulf %52, %38 : vector<8x32xf32>
    %56 = arith.mulf %51, %53 : vector<8x32xf32>
    %57 = arith.addf %55, %56 : vector<8x32xf32>
    %58 = math.tanh %57 : vector<8x32xf32>
    %59 = arith.mulf %54, %58 : vector<8x32xf32>
    %c2_i32 = arith.constant 2 : i32
    %c8_i32_20 = arith.constant 8 : i32
    %60 = arith.muli %c2_i32, %c8_i32_20 : i32
    %61 = tpu.assume_multiple %60, 8 : i32
    %62 = arith.index_cast %61 : i32 to index
    %c0_21 = arith.constant 0 : index
    %63 = vector.load %arg7[%62, %c0_21] : memref<64x128xf32, #tpu.memory_space<vmem>>, vector<8x128xf32>
    %cst_22 = arith.constant dense<0.000000e+00> : vector<8x128xf32>
    %64 = tpu.matmul %59, %7, %cst_22 {dimension_numbers = #tpu.dot_dimension_numbers<[1], [0], [0], [1], [0, 0, 1, 1], [], []>} : vector<8x32xf32>, vector<32x128xf32>, vector<8x128xf32> -> vector<8x128xf32>
    %65 = arith.addf %63, %64 : vector<8x128xf32>
    %66 = arith.mulf %65, %16 : vector<8x128xf32>
    %67 = math.tanh %66 : vector<8x128xf32>
    %68 = arith.mulf %67, %16 : vector<8x128xf32>
    %69 = arith.addf %68, %19 : vector<8x128xf32>
    %70 = vector.extract_strided_slice %69 {offsets = [0, 0], sizes = [8, 32], strides = [1, 1]} : vector<8x128xf32> to vector<8x32xf32>
    %71 = vector.extract_strided_slice %69 {offsets = [0, 32], sizes = [8, 32], strides = [1, 1]} : vector<8x128xf32> to vector<8x32xf32>
    %72 = vector.extract_strided_slice %69 {offsets = [0, 64], sizes = [8, 32], strides = [1, 1]} : vector<8x128xf32> to vector<8x32xf32>
    %73 = vector.extract_strided_slice %69 {offsets = [0, 96], sizes = [8, 32], strides = [1, 1]} : vector<8x128xf32> to vector<8x32xf32>
    %74 = arith.mulf %71, %57 : vector<8x32xf32>
    %75 = arith.mulf %70, %72 : vector<8x32xf32>
    %76 = arith.addf %74, %75 : vector<8x32xf32>
    %77 = math.tanh %76 : vector<8x32xf32>
    %78 = arith.mulf %73, %77 : vector<8x32xf32>
    %c3_i32 = arith.constant 3 : i32
    %c8_i32_23 = arith.constant 8 : i32
    %79 = arith.muli %c3_i32, %c8_i32_23 : i32
    %80 = tpu.assume_multiple %79, 8 : i32
    %81 = arith.index_cast %80 : i32 to index
    %c0_24 = arith.constant 0 : index
    %82 = vector.load %arg7[%81, %c0_24] : memref<64x128xf32, #tpu.memory_space<vmem>>, vector<8x128xf32>
    %cst_25 = arith.constant dense<0.000000e+00> : vector<8x128xf32>
    %83 = tpu.matmul %78, %7, %cst_25 {dimension_numbers = #tpu.dot_dimension_numbers<[1], [0], [0], [1], [0, 0, 1, 1], [], []>} : vector<8x32xf32>, vector<32x128xf32>, vector<8x128xf32> -> vector<8x128xf32>
    %84 = arith.addf %82, %83 : vector<8x128xf32>
    %85 = arith.mulf %84, %16 : vector<8x128xf32>
    %86 = math.tanh %85 : vector<8x128xf32>
    %87 = arith.mulf %86, %16 : vector<8x128xf32>
    %88 = arith.addf %87, %19 : vector<8x128xf32>
    %89 = vector.extract_strided_slice %88 {offsets = [0, 0], sizes = [8, 32], strides = [1, 1]} : vector<8x128xf32> to vector<8x32xf32>
    %90 = vector.extract_strided_slice %88 {offsets = [0, 32], sizes = [8, 32], strides = [1, 1]} : vector<8x128xf32> to vector<8x32xf32>
    %91 = vector.extract_strided_slice %88 {offsets = [0, 64], sizes = [8, 32], strides = [1, 1]} : vector<8x128xf32> to vector<8x32xf32>
    %92 = vector.extract_strided_slice %88 {offsets = [0, 96], sizes = [8, 32], strides = [1, 1]} : vector<8x128xf32> to vector<8x32xf32>
    %93 = arith.mulf %90, %76 : vector<8x32xf32>
    %94 = arith.mulf %89, %91 : vector<8x32xf32>
    %95 = arith.addf %93, %94 : vector<8x32xf32>
    %96 = math.tanh %95 : vector<8x32xf32>
    %97 = arith.mulf %92, %96 : vector<8x32xf32>
    %c4_i32 = arith.constant 4 : i32
    %c8_i32_26 = arith.constant 8 : i32
    %98 = arith.muli %c4_i32, %c8_i32_26 : i32
    %99 = tpu.assume_multiple %98, 8 : i32
    %100 = arith.index_cast %99 : i32 to index
    %c0_27 = arith.constant 0 : index
    %101 = vector.load %arg7[%100, %c0_27] : memref<64x128xf32, #tpu.memory_space<vmem>>, vector<8x128xf32>
    %cst_28 = arith.constant dense<0.000000e+00> : vector<8x128xf32>
    %102 = tpu.matmul %97, %7, %cst_28 {dimension_numbers = #tpu.dot_dimension_numbers<[1], [0], [0], [1], [0, 0, 1, 1], [], []>} : vector<8x32xf32>, vector<32x128xf32>, vector<8x128xf32> -> vector<8x128xf32>
    %103 = arith.addf %101, %102 : vector<8x128xf32>
    %104 = arith.mulf %103, %16 : vector<8x128xf32>
    %105 = math.tanh %104 : vector<8x128xf32>
    %106 = arith.mulf %105, %16 : vector<8x128xf32>
    %107 = arith.addf %106, %19 : vector<8x128xf32>
    %108 = vector.extract_strided_slice %107 {offsets = [0, 0], sizes = [8, 32], strides = [1, 1]} : vector<8x128xf32> to vector<8x32xf32>
    %109 = vector.extract_strided_slice %107 {offsets = [0, 32], sizes = [8, 32], strides = [1, 1]} : vector<8x128xf32> to vector<8x32xf32>
    %110 = vector.extract_strided_slice %107 {offsets = [0, 64], sizes = [8, 32], strides = [1, 1]} : vector<8x128xf32> to vector<8x32xf32>
    %111 = vector.extract_strided_slice %107 {offsets = [0, 96], sizes = [8, 32], strides = [1, 1]} : vector<8x128xf32> to vector<8x32xf32>
    %112 = arith.mulf %109, %95 : vector<8x32xf32>
    %113 = arith.mulf %108, %110 : vector<8x32xf32>
    %114 = arith.addf %112, %113 : vector<8x32xf32>
    %115 = math.tanh %114 : vector<8x32xf32>
    %116 = arith.mulf %111, %115 : vector<8x32xf32>
    %c5_i32 = arith.constant 5 : i32
    %c8_i32_29 = arith.constant 8 : i32
    %117 = arith.muli %c5_i32, %c8_i32_29 : i32
    %118 = tpu.assume_multiple %117, 8 : i32
    %119 = arith.index_cast %118 : i32 to index
    %c0_30 = arith.constant 0 : index
    %120 = vector.load %arg7[%119, %c0_30] : memref<64x128xf32, #tpu.memory_space<vmem>>, vector<8x128xf32>
    %cst_31 = arith.constant dense<0.000000e+00> : vector<8x128xf32>
    %121 = tpu.matmul %116, %7, %cst_31 {dimension_numbers = #tpu.dot_dimension_numbers<[1], [0], [0], [1], [0, 0, 1, 1], [], []>} : vector<8x32xf32>, vector<32x128xf32>, vector<8x128xf32> -> vector<8x128xf32>
    %122 = arith.addf %120, %121 : vector<8x128xf32>
    %123 = arith.mulf %122, %16 : vector<8x128xf32>
    %124 = math.tanh %123 : vector<8x128xf32>
    %125 = arith.mulf %124, %16 : vector<8x128xf32>
    %126 = arith.addf %125, %19 : vector<8x128xf32>
    %127 = vector.extract_strided_slice %126 {offsets = [0, 0], sizes = [8, 32], strides = [1, 1]} : vector<8x128xf32> to vector<8x32xf32>
    %128 = vector.extract_strided_slice %126 {offsets = [0, 32], sizes = [8, 32], strides = [1, 1]} : vector<8x128xf32> to vector<8x32xf32>
    %129 = vector.extract_strided_slice %126 {offsets = [0, 64], sizes = [8, 32], strides = [1, 1]} : vector<8x128xf32> to vector<8x32xf32>
    %130 = vector.extract_strided_slice %126 {offsets = [0, 96], sizes = [8, 32], strides = [1, 1]} : vector<8x128xf32> to vector<8x32xf32>
    %131 = arith.mulf %128, %114 : vector<8x32xf32>
    %132 = arith.mulf %127, %129 : vector<8x32xf32>
    %133 = arith.addf %131, %132 : vector<8x32xf32>
    %134 = math.tanh %133 : vector<8x32xf32>
    %135 = arith.mulf %130, %134 : vector<8x32xf32>
    %c6_i32 = arith.constant 6 : i32
    %c8_i32_32 = arith.constant 8 : i32
    %136 = arith.muli %c6_i32, %c8_i32_32 : i32
    %137 = tpu.assume_multiple %136, 8 : i32
    %138 = arith.index_cast %137 : i32 to index
    %c0_33 = arith.constant 0 : index
    %139 = vector.load %arg7[%138, %c0_33] : memref<64x128xf32, #tpu.memory_space<vmem>>, vector<8x128xf32>
    %cst_34 = arith.constant dense<0.000000e+00> : vector<8x128xf32>
    %140 = tpu.matmul %135, %7, %cst_34 {dimension_numbers = #tpu.dot_dimension_numbers<[1], [0], [0], [1], [0, 0, 1, 1], [], []>} : vector<8x32xf32>, vector<32x128xf32>, vector<8x128xf32> -> vector<8x128xf32>
    %141 = arith.addf %139, %140 : vector<8x128xf32>
    %142 = arith.mulf %141, %16 : vector<8x128xf32>
    %143 = math.tanh %142 : vector<8x128xf32>
    %144 = arith.mulf %143, %16 : vector<8x128xf32>
    %145 = arith.addf %144, %19 : vector<8x128xf32>
    %146 = vector.extract_strided_slice %145 {offsets = [0, 0], sizes = [8, 32], strides = [1, 1]} : vector<8x128xf32> to vector<8x32xf32>
    %147 = vector.extract_strided_slice %145 {offsets = [0, 32], sizes = [8, 32], strides = [1, 1]} : vector<8x128xf32> to vector<8x32xf32>
    %148 = vector.extract_strided_slice %145 {offsets = [0, 64], sizes = [8, 32], strides = [1, 1]} : vector<8x128xf32> to vector<8x32xf32>
    %149 = vector.extract_strided_slice %145 {offsets = [0, 96], sizes = [8, 32], strides = [1, 1]} : vector<8x128xf32> to vector<8x32xf32>
    %150 = arith.mulf %147, %133 : vector<8x32xf32>
    %151 = arith.mulf %146, %148 : vector<8x32xf32>
    %152 = arith.addf %150, %151 : vector<8x32xf32>
    %153 = math.tanh %152 : vector<8x32xf32>
    %154 = arith.mulf %149, %153 : vector<8x32xf32>
    %c7_i32 = arith.constant 7 : i32
    %c8_i32_35 = arith.constant 8 : i32
    %155 = arith.muli %c7_i32, %c8_i32_35 : i32
    %156 = tpu.assume_multiple %155, 8 : i32
    %157 = arith.index_cast %156 : i32 to index
    %c0_36 = arith.constant 0 : index
    %158 = vector.load %arg7[%157, %c0_36] : memref<64x128xf32, #tpu.memory_space<vmem>>, vector<8x128xf32>
    %cst_37 = arith.constant dense<0.000000e+00> : vector<8x128xf32>
    %159 = tpu.matmul %154, %7, %cst_37 {dimension_numbers = #tpu.dot_dimension_numbers<[1], [0], [0], [1], [0, 0, 1, 1], [], []>} : vector<8x32xf32>, vector<32x128xf32>, vector<8x128xf32> -> vector<8x128xf32>
    %160 = arith.addf %158, %159 : vector<8x128xf32>
    %161 = arith.mulf %160, %16 : vector<8x128xf32>
    %162 = math.tanh %161 : vector<8x128xf32>
    %163 = arith.mulf %162, %16 : vector<8x128xf32>
    %164 = arith.addf %163, %19 : vector<8x128xf32>
    %165 = vector.extract_strided_slice %164 {offsets = [0, 0], sizes = [8, 32], strides = [1, 1]} : vector<8x128xf32> to vector<8x32xf32>
    %166 = vector.extract_strided_slice %164 {offsets = [0, 32], sizes = [8, 32], strides = [1, 1]} : vector<8x128xf32> to vector<8x32xf32>
    %167 = vector.extract_strided_slice %164 {offsets = [0, 64], sizes = [8, 32], strides = [1, 1]} : vector<8x128xf32> to vector<8x32xf32>
    %168 = vector.extract_strided_slice %164 {offsets = [0, 96], sizes = [8, 32], strides = [1, 1]} : vector<8x128xf32> to vector<8x32xf32>
    %169 = arith.mulf %166, %152 : vector<8x32xf32>
    %170 = arith.mulf %165, %167 : vector<8x32xf32>
    %171 = arith.addf %169, %170 : vector<8x32xf32>
    %172 = math.tanh %171 : vector<8x32xf32>
    %173 = arith.mulf %168, %172 : vector<8x32xf32>
    %c8_i32_38 = arith.constant 8 : i32
    %c0_39 = arith.constant 0 : index
    %c0_40 = arith.constant 0 : index
    %174 = vector.load %arg4[%c0_39, %c0_40] : memref<32x16xf32, #tpu.memory_space<vmem>>, vector<32x16xf32>
    %cst_41 = arith.constant dense<0.000000e+00> : vector<8x16xf32>
    %175 = tpu.matmul %173, %174, %cst_41 {dimension_numbers = #tpu.dot_dimension_numbers<[1], [0], [0], [1], [0, 0, 1, 1], [], []>} : vector<8x32xf32>, vector<32x16xf32>, vector<8x16xf32> -> vector<8x16xf32>
    %c0_42 = arith.constant 0 : index
    %c0_43 = arith.constant 0 : index
    %176 = vector.load %arg5[%c0_42, %c0_43] : memref<1x16xf32, #tpu.memory_space<vmem>>, vector<1x16xf32>
    %177 = vector.broadcast %176 : vector<1x16xf32> to vector<8x16xf32>
    %178 = arith.addf %175, %177 : vector<8x16xf32>
    %c0_44 = arith.constant 0 : index
    %c0_45 = arith.constant 0 : index
    %179 = vector.load %arg6[%c0_44, %c0_45] : memref<8x16xf32, #tpu.memory_space<vmem>>, vector<8x16xf32>
    tpu.vector_store %arg6[%c0_44, %c0_45], %178 {strides = array<i32>} : memref<8x16xf32, #tpu.memory_space<vmem>>, vector<8x16xf32>,
    return
  }
}

</mosaic_0001>

<llo_original>
// kernel: tpu_custom_call.1
$region0: #{tpu_custom_call.1}
  #allocation0 [shape = 'u32[]', space=smem, size = 0x4, offset = 0x4, fixed_abs, tag = 'smem constant byte address 0x4 - core index']
  #allocation1 [shape = 'u32[144,128]{1,0:T(1,128)}', space=vmem, size = 0x12000, scoped, tag = 'internal scratch']
  #allocation2 [shape = 'f32[64,128]{1,0:T(8,128)}', space=vmem, size = 0x8000, scoped, tag = 'scratch operand']
  %s0 = inlined_call_operand.vmem [shape: f32[64,8], index: 0, kind: input, shape index: {}]
  %s1 = inlined_call_operand.vmem [shape: f32[8,128], index: 1, kind: input, shape index: {}]
  %s2 = inlined_call_operand.vmem [shape: f32[32,128], index: 2, kind: input, shape index: {}]
  %s3 = inlined_call_operand.vmem [shape: f32[1,128], index: 3, kind: input, shape index: {}]
  %s4 = inlined_call_operand.vmem [shape: f32[32,16], index: 4, kind: input, shape index: {}]
  %s5 = inlined_call_operand.vmem [shape: f32[1,16], index: 5, kind: input, shape index: {}]
  %s6 = inlined_call_operand.hbm [shape: f32[8,16], index: 6, kind: output, shape index: {}]
  %s7 = sld [smem:[#allocation0]]
  $region34: #{tpu_custom_call.1} parent=0
    _
  %s9 = ssub.s32 1, %s7
  %s10 = scalar_select 0, %s9, %s7
  $region1: #{tpu_custom_call.1} parent=0
    #allocation3 [shape = 'u8[4096]{0}', space=vmem, size = 0x1000, scoped, tag = 'output window, operand 0, single buffered']
    #allocation4 [shape = 's32[1]{0}', space=sflag, size = 0x4, scoped, tag = 'scoped memory for tpu_custom_call.1']
    %11 = vsyncpa [#allocation4], 0
    // Predicated region
    $region2: #{tpu_custom_call.1} parent=1 // pred_check
      _
    $region3: #{tpu_custom_call.1} parent=1 // pred_check_branch
      %13 = sbr.rel (0) target = $region5
    $region4: #{tpu_custom_call.1} parent=1 // pred_region
      _
    $region5: #{tpu_custom_call.1} parent=1 // pred_fallthru
      _
    // Predicated region
    $region6: #{tpu_custom_call.1} parent=1 // pred_check
      _
    $region7: #{tpu_custom_call.1} parent=1 // pred_check_branch
      %15 = sbr.rel (0) target = $region9
    $region8: #{tpu_custom_call.1} parent=1 // pred_region
      _
    $region9: #{tpu_custom_call.1} parent=1 // pred_fallthru
      _
    // Predicated region
    $region10: #{tpu_custom_call.1} parent=1 // pred_check
      _
    $region11: #{tpu_custom_call.1} parent=1 // pred_check_branch
      %17 = sbr.rel (0) target = $region13
    $region12: #{tpu_custom_call.1} parent=1 // pred_region
      _
    $region13: #{tpu_custom_call.1} parent=1 // pred_fallthru
      _
    // Predicated region
    $region14: #{tpu_custom_call.1} parent=1 // pred_check
      _
    $region15: #{tpu_custom_call.1} parent=1 // pred_check_branch
      %19 = sbr.rel (0) target = $region17
    $region16: #{tpu_custom_call.1} parent=1 // pred_region
      _
    $region17: #{tpu_custom_call.1} parent=1 // pred_fallthru
      _
    // Predicated region
    $region18: #{tpu_custom_call.1} parent=1 // pred_check
      _
    $region19: #{tpu_custom_call.1} parent=1 // pred_check_branch
      %21 = sbr.rel (0) target = $region21
    $region20: #{tpu_custom_call.1} parent=1 // pred_region
      _
    $region21: #{tpu_custom_call.1} parent=1 // pred_fallthru
      _
    // Predicated region
    $region22: #{tpu_custom_call.1} parent=1 // pred_check
      _
    $region23: #{tpu_custom_call.1} parent=1 // pred_check_branch
      %23 = sbr.rel (0) target = $region25
    $region24: #{tpu_custom_call.1} parent=1 // pred_region
      _
    $region25: #{tpu_custom_call.1} parent=1 // pred_fallthru
      _
    %v24 = vld [vmem:[%s0] sm:$0xff]
    %v25 = vld [vmem:[%s0 + $0x8] sm:$0xff]
    %v26 = vld [vmem:[%s0 + $0x10] sm:$0xff]
    %v27 = vld [vmem:[%s0 + $0x18] sm:$0xff]
    %v28 = vld [vmem:[%s0 + $0x20] sm:$0xff]
    %v29 = vld [vmem:[%s0 + $0x28] sm:$0xff]
    %v30 = vld [vmem:[%s0 + $0x30] sm:$0xff]
    %v31 = vld [vmem:[%s0 + $0x38] sm:$0xff]
    %v32 = vld [vmem:[%s1] sm:$0xff]
    %v33 = vld [vmem:[%s3] sm:$0x1]
    %v35 = vlaneseq
    %v36 = vshrl.u32 %v35, 7
    %v37 = vsub.s32 0, %v36
    %v38 = vrot.slane %v33, %v37
    %vm40 = vcmask 64512
    %v42 = vsel %vm40, %v24, 0
    %v45 = vsel %vm40, %v25, 0
    %v48 = vsel %vm40, %v26, 0
    %v51 = vsel %vm40, %v27, 0
    %v54 = vsel %vm40, %v28, 0
    %v57 = vsel %vm40, %v29, 0
    %v60 = vsel %vm40, %v30, 0
    %v63 = vsel %vm40, %v31, 0
    %65 = vmatprep.subr.mxu0 0.0
    %66 = vmatpush1.msra.mxu0 0.0
    %67 = vmatprep.subr.mxu0 0.0
    %68 = vmatpush1.msra.mxu0 0.0
    %69 = vmatprep.subr.mxu0 0.0
    %70 = vmatpush1.msra.mxu0 0.0
    %71 = vmatprep.subr.mxu0 0.0
    %72 = vmatpush1.msra.mxu0 0.0
    %73 = vmatprep.subr.mxu0 0.0
    %74 = vmatpush1.msra.mxu0 0.0
    %75 = vmatprep.subr.mxu0 0.0
    %76 = vmatpush1.msra.mxu0 0.0
    %77 = vmatprep.subr.mxu0 0.0
    %78 = vmatpush1.msra.mxu0 0.0
    %79 = vmatprep.subr.mxu0 0.0
    %80 = vmatpush1.msra.mxu0 0.0
    %81 = vmatprep.subr.mxu0 0.0
    %82 = vmatpush1.msra.mxu0 0.0
    %83 = vmatprep.subr.mxu0 0.0
    %84 = vmatpush1.msra.mxu0 0.0
    %85 = vmatprep.subr.mxu0 0.0
    %86 = vmatpush1.msra.mxu0 0.0
    %87 = vmatprep.subr.mxu0 0.0
    %88 = vmatpush1.msra.mxu0 0.0
    %89 = vmatprep.subr.mxu0 0.0
    %90 = vmatpush1.msra.mxu0 0.0
    %91 = vmatprep.subr.mxu0 0.0
    %92 = vmatpush1.msra.mxu0 0.0
    %93 = vmatprep.subr.mxu0 0.0
    %94 = vmatpush1.msra.mxu0 0.0
    %95 = vmatprep.subr.mxu0 0.0
    %96 = vmatpush1.msra.mxu0 %v32
    %97 = vmatprep.subr.mxu0 0.0
    %98 = vmatpush2.msra.mxu0 0.0
    %99 = vmatprep.subr.mxu0 0.0
    %100 = vmatpush2.msra.mxu0 0.0
    %101 = vmatprep.subr.mxu0 0.0
    %102 = vmatpush2.msra.mxu0 0.0
    %103 = vmatprep.subr.mxu0 0.0
    %104 = vmatpush2.msra.mxu0 0.0
    %105 = vmatprep.subr.mxu0 0.0
    %106 = vmatpush2.msra.mxu0 0.0
    %107 = vmatprep.subr.mxu0 0.0
    %108 = vmatpush2.msra.mxu0 0.0
    %109 = vmatprep.subr.mxu0 0.0
    %110 = vmatpush2.msra.mxu0 0.0
    %111 = vmatprep.subr.mxu0 0.0
    %112 = vmatpush2.msra.mxu0 0.0
    %113 = vmatprep.subr.mxu0 0.0
    %114 = vmatpush2.msra.mxu0 0.0
    %115 = vmatprep.subr.mxu0 0.0
    %116 = vmatpush2.msra.mxu0 0.0
    %117 = vmatprep.subr.mxu0 0.0
    %118 = vmatpush2.msra.mxu0 0.0
    %119 = vmatprep.subr.mxu0 0.0
    %120 = vmatpush2.msra.mxu0 0.0
    %121 = vmatprep.subr.mxu0 0.0
    %122 = vmatpush2.msra.mxu0 0.0
    %123 = vmatprep.subr.mxu0 0.0
    %124 = vmatpush2.msra.mxu0 0.0
    %125 = vmatprep.subr.mxu0 0.0
    %126 = vmatpush2.msra.mxu0 0.0
    %127 = vmatprep.subr.mxu0 0.0
    %128 = vmatpush2.msra.mxu0 0.0
    %129 = vmatprep.mubr.f32.mxu0 0.0
    %130 = vmatmul.mubr.f32.gmra.mxu0 %v42
    %v131 = vpop.f32.mrf.mxu0
    %v132 = vadd.f32 %v38, %v131
    %v133 = vpop.f32.mrf.mxu0
    %134 = vmatprep.mubr.f32.mxu0 0.0
    %135 = vmatmul.mubr.f32.gmra.mxu0 %v45
    %v136 = vpop.f32.mrf.mxu0
    %v137 = vadd.f32 %v38, %v136
    %v138 = vpop.f32.mrf.mxu0
    %139 = vmatprep.mubr.f32.mxu0 0.0
    %140 = vmatmul.mubr.f32.gmra.mxu0 %v48
    %v141 = vpop.f32.mrf.mxu0
    %v142 = vadd.f32 %v38, %v141
    %v143 = vpop.f32.mrf.mxu0
    %144 = vmatprep.mubr.f32.mxu0 0.0
    %145 = vmatmul.mubr.f32.gmra.mxu0 %v51
    %v146 = vpop.f32.mrf.mxu0
    %v147 = vadd.f32 %v38, %v146
    %v148 = vpop.f32.mrf.mxu0
    %149 = vmatprep.mubr.f32.mxu0 0.0
    %150 = vmatmul.mubr.f32.gmra.mxu0 %v54
    %v151 = vpop.f32.mrf.mxu0
    %v152 = vadd.f32 %v38, %v151
    %v153 = vpop.f32.mrf.mxu0
    %154 = vmatprep.mubr.f32.mxu0 0.0
    %155 = vmatmul.mubr.f32.gmra.mxu0 %v57
    %v156 = vpop.f32.mrf.mxu0
    %v157 = vadd.f32 %v38, %v156
    %v158 = vpop.f32.mrf.mxu0
    %159 = vmatprep.mubr.f32.mxu0 0.0
    %160 = vmatmul.mubr.f32.gmra.mxu0 %v60
    %v161 = vpop.f32.mrf.mxu0
    %v162 = vadd.f32 %v38, %v161
    %v163 = vpop.f32.mrf.mxu0
    %164 = vmatprep.mubr.f32.mxu0 0.0
    %165 = vmatmul.mubr.f32.gmra.mxu0 %v63
    %v166 = vpop.f32.mrf.mxu0
    %v167 = vadd.f32 %v38, %v166
    %v168 = vpop.f32.mrf.mxu0
    %169 = vdwg.mxu0
    %170 = vst [vmem:[#allocation2] sm:$0xff] %v132
    %171 = vst [vmem:[#allocation2 + $0x8] sm:$0xff] %v137
    %172 = vst [vmem:[#allocation2 + $0x10] sm:$0xff] %v142
    %173 = vst [vmem:[#allocation2 + $0x18] sm:$0xff] %v147
    %174 = vst [vmem:[#allocation2 + $0x20] sm:$0xff] %v152
    %175 = vst [vmem:[#allocation2 + $0x28] sm:$0xff] %v157
    %176 = vst [vmem:[#allocation2 + $0x30] sm:$0xff] %v162
    %177 = vst [vmem:[#allocation2 + $0x38] sm:$0xff] %v167
    %v178 = vld [vmem:[%s2] sm:$0xff]
    %v179 = vld [vmem:[%s2 + $0x8] sm:$0xff]
    %v180 = vld [vmem:[%s2 + $0x10] sm:$0xff]
    %v181 = vld [vmem:[%s2 + $0x18] sm:$0xff]
    %v182 = vlaneseq
    %v183 = vand.u32 %v182, 127
    %vm184 = vcmp.ge.s32.totalorder %v183, 64
    %vm185 = vcmp.lt.s32.totalorder %v183, 96
    %vm186 = vmand %vm184, %vm185
    %v187 = vsel %vm186, 1.0, 0.5
    %v188 = vsel %vm186, 0.0, 0.5
    %v189 = vld [vmem:[#allocation2] sm:$0xff]
    %vm190 = vcmask 261120
    %v192 = vsel %vm190, 0.0, 0
    %194 = vmatprep.subr.mxu0 0.0
    %195 = vmatpush1.msra.mxu0 0.0
    %196 = vmatprep.subr.mxu0 0.0
    %197 = vmatpush1.msra.mxu0 0.0
    %198 = vmatprep.subr.mxu0 0.0
    %199 = vmatpush1.msra.mxu0 0.0
    %200 = vmatprep.subr.mxu0 0.0
    %201 = vmatpush1.msra.mxu0 0.0
    %202 = vmatprep.subr.mxu0 0.0
    %203 = vmatpush1.msra.mxu0 0.0
    %204 = vmatprep.subr.mxu0 0.0
    %205 = vmatpush1.msra.mxu0 0.0
    %206 = vmatprep.subr.mxu0 0.0
    %207 = vmatpush1.msra.mxu0 0.0
    %208 = vmatprep.subr.mxu0 0.0
    %209 = vmatpush1.msra.mxu0 0.0
    %210 = vmatprep.subr.mxu0 0.0
    %211 = vmatpush1.msra.mxu0 0.0
    %212 = vmatprep.subr.mxu0 0.0
    %213 = vmatpush1.msra.mxu0 0.0
    %214 = vmatprep.subr.mxu0 0.0
    %215 = vmatpush1.msra.mxu0 0.0
    %216 = vmatprep.subr.mxu0 0.0
    %217 = vmatpush1.msra.mxu0 0.0
    %218 = vmatprep.subr.mxu0 0.0
    %219 = vmatpush1.msra.mxu0 %v181
    %220 = vmatprep.subr.mxu0 0.0
    %221 = vmatpush1.msra.mxu0 %v180
    %222 = vmatprep.subr.mxu0 0.0
    %223 = vmatpush1.msra.mxu0 %v179
    %224 = vmatprep.subr.mxu0 0.0
    %225 = vmatpush1.msra.mxu0 %v178
    %226 = vmatprep.subr.mxu0 0.0
    %227 = vmatpush2.msra.mxu0 0.0
    %228 = vmatprep.subr.mxu0 0.0
    %229 = vmatpush2.msra.mxu0 0.0
    %230 = vmatprep.subr.mxu0 0.0
    %231 = vmatpush2.msra.mxu0 0.0
    %232 = vmatprep.subr.mxu0 0.0
    %233 = vmatpush2.msra.mxu0 0.0
    %234 = vmatprep.subr.mxu0 0.0
    %235 = vmatpush2.msra.mxu0 0.0
    %236 = vmatprep.subr.mxu0 0.0
    %237 = vmatpush2.msra.mxu0 0.0
    %238 = vmatprep.subr.mxu0 0.0
    %239 = vmatpush2.msra.mxu0 0.0
    %240 = vmatprep.subr.mxu0 0.0
    %241 = vmatpush2.msra.mxu0 0.0
    %242 = vmatprep.subr.mxu0 0.0
    %243 = vmatpush2.msra.mxu0 0.0
    %244 = vmatprep.subr.mxu0 0.0
    %245 = vmatpush2.msra.mxu0 0.0
    %246 = vmatprep.subr.mxu0 0.0
    %247 = vmatpush2.msra.mxu0 0.0
    %248 = vmatprep.subr.mxu0 0.0
    %249 = vmatpush2.msra.mxu0 0.0
    %250 = vmatprep.subr.mxu0 0.0
    %251 = vmatpush2.msra.mxu0 0.0
    %252 = vmatprep.subr.mxu0 0.0
    %253 = vmatpush2.msra.mxu0 0.0
    %254 = vmatprep.subr.mxu0 0.0
    %255 = vmatpush2.msra.mxu0 0.0
    %256 = vmatprep.subr.mxu0 0.0
    %257 = vmatpush2.msra.mxu0 0.0
    %258 = vmatprep.mubr.f32.mxu0 0.0
    %259 = vmatmul.mubr.f32.gmra.mxu0 %v192
    %v260 = vpop.f32.mrf.mxu0
    %v261 = vadd.f32 0.0, %v260
    %v262 = vpop.f32.mrf.mxu0
    %263 = vdwg.mxu0
    %v264 = vadd.f32 %v189, %v261
    %v265 = vmul.f32 %v264, %v187
    %v266 = vtanh.pop %v265
    %v267 = vmul.f32 %v266, %v187
    %v268 = vadd.f32 %v267, %v188
    %v269 = vmul.f32 %v268, 0.0
    %271 = vrot.lane.b32.xlu0 %v268, 64
    %v272 = vpop.permute.xlu0 %271
    %v274 = vmul.f32 %v268, %v272
    %276 = vrot.lane.b32.xlu0 %v274, 32
    %v277 = vpop.permute.xlu0 %276
    %v279 = vadd.f32 %v269, %v277
    %v280 = vtanh.pop %v279
    %282 = vrot.lane.b32.xlu0 %v280, 64
    %v283 = vpop.permute.xlu0 %282
    %v285 = vmul.f32 %v268, %v283
    %s286 = scalar_lea.vmem [#allocation2], 8
    %v287 = vld [vmem:[%s286] sm:$0xff]
    %289 = vrot.lane.b32.xlu0 %v285, 32
    %v290 = vpop.permute.xlu0 %289
    %v291 = vsel %vm190, %v290, 0
    %293 = vmatprep.subr.mxu0 0.0
    %294 = vmatpush1.msra.mxu0 0.0
    %295 = vmatprep.subr.mxu0 0.0
    %296 = vmatpush1.msra.mxu0 0.0
    %297 = vmatprep.subr.mxu0 0.0
    %298 = vmatpush1.msra.mxu0 0.0
    %299 = vmatprep.subr.mxu0 0.0
    %300 = vmatpush1.msra.mxu0 0.0
    %301 = vmatprep.subr.mxu0 0.0
    %302 = vmatpush1.msra.mxu0 0.0
    %303 = vmatprep.subr.mxu0 0.0
    %304 = vmatpush1.msra.mxu0 0.0
    %305 = vmatprep.subr.mxu0 0.0
    %306 = vmatpush1.msra.mxu0 0.0
    %307 = vmatprep.subr.mxu0 0.0
    %308 = vmatpush1.msra.mxu0 0.0
    %309 = vmatprep.subr.mxu0 0.0
    %310 = vmatpush1.msra.mxu0 0.0
    %311 = vmatprep.subr.mxu0 0.0
    %312 = vmatpush1.msra.mxu0 0.0
    %313 = vmatprep.subr.mxu0 0.0
    %314 = vmatpush1.msra.mxu0 0.0
    %315 = vmatprep.subr.mxu0 0.0
    %316 = vmatpush1.msra.mxu0 0.0
    %317 = vmatprep.subr.mxu0 0.0
    %318 = vmatpush1.msra.mxu0 %v181
    %319 = vmatprep.subr.mxu0 0.0
    %320 = vmatpush1.msra.mxu0 %v180
    %321 = vmatprep.subr.mxu0 0.0
    %322 = vmatpush1.msra.mxu0 %v179
    %323 = vmatprep.subr.mxu0 0.0
    %324 = vmatpush1.msra.mxu0 %v178
    %325 = vmatprep.subr.mxu0 0.0
    %326 = vmatpush2.msra.mxu0 0.0
    %327 = vmatprep.subr.mxu0 0.0
    %328 = vmatpush2.msra.mxu0 0.0
    %329 = vmatprep.subr.mxu0 0.0
    %330 = vmatpush2.msra.mxu0 0.0
    %331 = vmatprep.subr.mxu0 0.0
    %332 = vmatpush2.msra.mxu0 0.0
    %333 = vmatprep.subr.mxu0 0.0
    %334 = vmatpush2.msra.mxu0 0.0
    %335 = vmatprep.subr.mxu0 0.0
    %336 = vmatpush2.msra.mxu0 0.0
    %337 = vmatprep.subr.mxu0 0.0
    %338 = vmatpush2.msra.mxu0 0.0
    %339 = vmatprep.subr.mxu0 0.0
    %340 = vmatpush2.msra.mxu0 0.0
    %341 = vmatprep.subr.mxu0 0.0
    %342 = vmatpush2.msra.mxu0 0.0
    %343 = vmatprep.subr.mxu0 0.0
    %344 = vmatpush2.msra.mxu0 0.0
    %345 = vmatprep.subr.mxu0 0.0
    %346 = vmatpush2.msra.mxu0 0.0
    %347 = vmatprep.subr.mxu0 0.0
    %348 = vmatpush2.msra.mxu0 0.0
    %349 = vmatprep.subr.mxu0 0.0
    %350 = vmatpush2.msra.mxu0 0.0
    %351 = vmatprep.subr.mxu0 0.0
    %352 = vmatpush2.msra.mxu0 0.0
    %353 = vmatprep.subr.mxu0 0.0
    %354 = vmatpush2.msra.mxu0 0.0
    %355 = vmatprep.subr.mxu0 0.0
    %356 = vmatpush2.msra.mxu0 0.0
    %357 = vmatprep.mubr.f32.mxu0 0.0
    %358 = vmatmul.mubr.f32.gmra.mxu0 %v291
    %v359 = vpop.f32.mrf.mxu0
    %v360 = vadd.f32 0.0, %v359
    %v361 = vpop.f32.mrf.mxu0
    %362 = vdwg.mxu0
    %v363 = vadd.f32 %v287, %v360
    %v364 = vmul.f32 %v363, %v187
    %v365 = vtanh.pop %v364
    %v366 = vmul.f32 %v365, %v187
    %v367 = vadd.f32 %v366, %v188
    %v368 = vmul.f32 %v367, %v279
    %370 = vrot.lane.b32.xlu0 %v367, 64
    %v371 = vpop.permute.xlu0 %370
    %v373 = vmul.f32 %v367, %v371
    %375 = vrot.lane.b32.xlu0 %v373, 32
    %v376 = vpop.permute.xlu0 %375
    %v378 = vadd.f32 %v368, %v376
    %v379 = vtanh.pop %v378
    %381 = vrot.lane.b32.xlu0 %v379, 64
    %v382 = vpop.permute.xlu0 %381
    %v384 = vmul.f32 %v367, %v382
    %s385 = scalar_lea.vmem [#allocation2], 16
    %v386 = vld [vmem:[%s385] sm:$0xff]
    %388 = vrot.lane.b32.xlu0 %v384, 32
    %v389 = vpop.permute.xlu0 %388
    %v390 = vsel %vm190, %v389, 0
    %392 = vmatprep.subr.mxu0 0.0
    %393 = vmatpush1.msra.mxu0 0.0
    %394 = vmatprep.subr.mxu0 0.0
    %395 = vmatpush1.msra.mxu0 0.0
    %396 = vmatprep.subr.mxu0 0.0
    %397 = vmatpush1.msra.mxu0 0.0
    %398 = vmatprep.subr.mxu0 0.0
    %399 = vmatpush1.msra.mxu0 0.0
    %400 = vmatprep.subr.mxu0 0.0
    %401 = vmatpush1.msra.mxu0 0.0
    %402 = vmatprep.subr.mxu0 0.0
    %403 = vmatpush1.msra.mxu0 0.0
    %404 = vmatprep.subr.mxu0 0.0
    %405 = vmatpush1.msra.mxu0 0.0
    %406 = vmatprep.subr.mxu0 0.0
    %407 = vmatpush1.msra.mxu0 0.0
    %408 = vmatprep.subr.mxu0 0.0
    %409 = vmatpush1.msra.mxu0 0.0
    %410 = vmatprep.subr.mxu0 0.0
    %411 = vmatpush1.msra.mxu0 0.0
    %412 = vmatprep.subr.mxu0 0.0
    %413 = vmatpush1.msra.mxu0 0.0
    %414 = vmatprep.subr.mxu0 0.0
    %415 = vmatpush1.msra.mxu0 0.0
    %416 = vmatprep.subr.mxu0 0.0
    %417 = vmatpush1.msra.mxu0 %v181
    %418 = vmatprep.subr.mxu0 0.0
    %419 = vmatpush1.msra.mxu0 %v180
    %420 = vmatprep.subr.mxu0 0.0
    %421 = vmatpush1.msra.mxu0 %v179
    %422 = vmatprep.subr.mxu0 0.0
    %423 = vmatpush1.msra.mxu0 %v178
    %424 = vmatprep.subr.mxu0 0.0
    %425 = vmatpush2.msra.mxu0 0.0
    %426 = vmatprep.subr.mxu0 0.0
    %427 = vmatpush2.msra.mxu0 0.0
    %428 = vmatprep.subr.mxu0 0.0
    %429 = vmatpush2.msra.mxu0 0.0
    %430 = vmatprep.subr.mxu0 0.0
    %431 = vmatpush2.msra.mxu0 0.0
    %432 = vmatprep.subr.mxu0 0.0
    %433 = vmatpush2.msra.mxu0 0.0
    %434 = vmatprep.subr.mxu0 0.0
    %435 = vmatpush2.msra.mxu0 0.0
    %436 = vmatprep.subr.mxu0 0.0
    %437 = vmatpush2.msra.mxu0 0.0
    %438 = vmatprep.subr.mxu0 0.0
    %439 = vmatpush2.msra.mxu0 0.0
    %440 = vmatprep.subr.mxu0 0.0
    %441 = vmatpush2.msra.mxu0 0.0
    %442 = vmatprep.subr.mxu0 0.0
    %443 = vmatpush2.msra.mxu0 0.0
    %444 = vmatprep.subr.mxu0 0.0
    %445 = vmatpush2.msra.mxu0 0.0
    %446 = vmatprep.subr.mxu0 0.0
    %447 = vmatpush2.msra.mxu0 0.0
    %448 = vmatprep.subr.mxu0 0.0
    %449 = vmatpush2.msra.mxu0 0.0
    %450 = vmatprep.subr.mxu0 0.0
    %451 = vmatpush2.msra.mxu0 0.0
    %452 = vmatprep.subr.mxu0 0.0
    %453 = vmatpush2.msra.mxu0 0.0
    %454 = vmatprep.subr.mxu0 0.0
    %455 = vmatpush2.msra.mxu0 0.0
    %456 = vmatprep.mubr.f32.mxu0 0.0
    %457 = vmatmul.mubr.f32.gmra.mxu0 %v390
    %v458 = vpop.f32.mrf.mxu0
    %v459 = vadd.f32 0.0, %v458
    %v460 = vpop.f32.mrf.mxu0
    %461 = vdwg.mxu0
    %v462 = vadd.f32 %v386, %v459
    %v463 = vmul.f32 %v462, %v187
    %v464 = vtanh.pop %v463
    %v465 = vmul.f32 %v464, %v187
    %v466 = vadd.f32 %v465, %v188
    %v467 = vmul.f32 %v466, %v378
    %469 = vrot.lane.b32.xlu0 %v466, 64
    %v470 = vpop.permute.xlu0 %469
    %v472 = vmul.f32 %v466, %v470
    %474 = vrot.lane.b32.xlu0 %v472, 32
    %v475 = vpop.permute.xlu0 %474
    %v477 = vadd.f32 %v467, %v475
    %v478 = vtanh.pop %v477
    %480 = vrot.lane.b32.xlu0 %v478, 64
    %v481 = vpop.permute.xlu0 %480
    %v483 = vmul.f32 %v466, %v481
    %s484 = scalar_lea.vmem [#allocation2], 24
    %v485 = vld [vmem:[%s484] sm:$0xff]
    %487 = vrot.lane.b32.xlu0 %v483, 32
    %v488 = vpop.permute.xlu0 %487
    %v489 = vsel %vm190, %v488, 0
    %491 = vmatprep.subr.mxu0 0.0
    %492 = vmatpush1.msra.mxu0 0.0
    %493 = vmatprep.subr.mxu0 0.0
    %494 = vmatpush1.msra.mxu0 0.0
    %495 = vmatprep.subr.mxu0 0.0
    %496 = vmatpush1.msra.mxu0 0.0
    %497 = vmatprep.subr.mxu0 0.0
    %498 = vmatpush1.msra.mxu0 0.0
    %499 = vmatprep.subr.mxu0 0.0
    %500 = vmatpush1.msra.mxu0 0.0
    %501 = vmatprep.subr.mxu0 0.0
    %502 = vmatpush1.msra.mxu0 0.0
    %503 = vmatprep.subr.mxu0 0.0
    %504 = vmatpush1.msra.mxu0 0.0
    %505 = vmatprep.subr.mxu0 0.0
    %506 = vmatpush1.msra.mxu0 0.0
    %507 = vmatprep.subr.mxu0 0.0
    %508 = vmatpush1.msra.mxu0 0.0
    %509 = vmatprep.subr.mxu0 0.0
    %510 = vmatpush1.msra.mxu0 0.0
    %511 = vmatprep.subr.mxu0 0.0
    %512 = vmatpush1.msra.mxu0 0.0
    %513 = vmatprep.subr.mxu0 0.0
    %514 = vmatpush1.msra.mxu0 0.0
    %515 = vmatprep.subr.mxu0 0.0
    %516 = vmatpush1.msra.mxu0 %v181
    %517 = vmatprep.subr.mxu0 0.0
    %518 = vmatpush1.msra.mxu0 %v180
    %519 = vmatprep.subr.mxu0 0.0
    %520 = vmatpush1.msra.mxu0 %v179
    %521 = vmatprep.subr.mxu0 0.0
    %522 = vmatpush1.msra.mxu0 %v178
    %523 = vmatprep.subr.mxu0 0.0
    %524 = vmatpush2.msra.mxu0 0.0
    %525 = vmatprep.subr.mxu0 0.0
    %526 = vmatpush2.msra.mxu0 0.0
    %527 = vmatprep.subr.mxu0 0.0
    %528 = vmatpush2.msra.mxu0 0.0
    %529 = vmatprep.subr.mxu0 0.0
    %530 = vmatpush2.msra.mxu0 0.0
    %531 = vmatprep.subr.mxu0 0.0
    %532 = vmatpush2.msra.mxu0 0.0
    %533 = vmatprep.subr.mxu0 0.0
    %534 = vmatpush2.msra.mxu0 0.0
    %535 = vmatprep.subr.mxu0 0.0
    %536 = vmatpush2.msra.mxu0 0.0
    %537 = vmatprep.subr.mxu0 0.0
    %538 = vmatpush2.msra.mxu0 0.0
    %539 = vmatprep.subr.mxu0 0.0
    %540 = vmatpush2.msra.mxu0 0.0
    %541 = vmatprep.subr.mxu0 0.0
    %542 = vmatpush2.msra.mxu0 0.0
    %543 = vmatprep.subr.mxu0 0.0
    %544 = vmatpush2.msra.mxu0 0.0
    %545 = vmatprep.subr.mxu0 0.0
    %546 = vmatpush2.msra.mxu0 0.0
    %547 = vmatprep.subr.mxu0 0.0
    %548 = vmatpush2.msra.mxu0 0.0
    %549 = vmatprep.subr.mxu0 0.0
    %550 = vmatpush2.msra.mxu0 0.0
    %551 = vmatprep.subr.mxu0 0.0
    %552 = vmatpush2.msra.mxu0 0.0
    %553 = vmatprep.subr.mxu0 0.0
    %554 = vmatpush2.msra.mxu0 0.0
    %555 = vmatprep.mubr.f32.mxu0 0.0
    %556 = vmatmul.mubr.f32.gmra.mxu0 %v489
    %v557 = vpop.f32.mrf.mxu0
    %v558 = vadd.f32 0.0, %v557
    %v559 = vpop.f32.mrf.mxu0
    %560 = vdwg.mxu0
    %v561 = vadd.f32 %v485, %v558
    %v562 = vmul.f32 %v561, %v187
    %v563 = vtanh.pop %v562
    %v564 = vmul.f32 %v563, %v187
    %v565 = vadd.f32 %v564, %v188
    %v566 = vmul.f32 %v565, %v477
    %568 = vrot.lane.b32.xlu0 %v565, 64
    %v569 = vpop.permute.xlu0 %568
    %v571 = vmul.f32 %v565, %v569
    %573 = vrot.lane.b32.xlu0 %v571, 32
    %v574 = vpop.permute.xlu0 %573
    %v576 = vadd.f32 %v566, %v574
    %v577 = vtanh.pop %v576
    %579 = vrot.lane.b32.xlu0 %v577, 64
    %v580 = vpop.permute.xlu0 %579
    %v582 = vmul.f32 %v565, %v580
    %s583 = scalar_lea.vmem [#allocation2], 32
    %v584 = vld [vmem:[%s583] sm:$0xff]
    %586 = vrot.lane.b32.xlu0 %v582, 32
    %v587 = vpop.permute.xlu0 %586
    %v588 = vsel %vm190, %v587, 0
    %590 = vmatprep.subr.mxu0 0.0
    %591 = vmatpush1.msra.mxu0 0.0
    %592 = vmatprep.subr.mxu0 0.0
    %593 = vmatpush1.msra.mxu0 0.0
    %594 = vmatprep.subr.mxu0 0.0
    %595 = vmatpush1.msra.mxu0 0.0
    %596 = vmatprep.subr.mxu0 0.0
    %597 = vmatpush1.msra.mxu0 0.0
    %598 = vmatprep.subr.mxu0 0.0
    %599 = vmatpush1.msra.mxu0 0.0
    %600 = vmatprep.subr.mxu0 0.0
    %601 = vmatpush1.msra.mxu0 0.0
    %602 = vmatprep.subr.mxu0 0.0
    %603 = vmatpush1.msra.mxu0 0.0
    %604 = vmatprep.subr.mxu0 0.0
    %605 = vmatpush1.msra.mxu0 0.0
    %606 = vmatprep.subr.mxu0 0.0
    %607 = vmatpush1.msra.mxu0 0.0
    %608 = vmatprep.subr.mxu0 0.0
    %609 = vmatpush1.msra.mxu0 0.0
    %610 = vmatprep.subr.mxu0 0.0
    %611 = vmatpush1.msra.mxu0 0.0
    %612 = vmatprep.subr.mxu0 0.0
    %613 = vmatpush1.msra.mxu0 0.0
    %614 = vmatprep.subr.mxu0 0.0
    %615 = vmatpush1.msra.mxu0 %v181
    %616 = vmatprep.subr.mxu0 0.0
    %617 = vmatpush1.msra.mxu0 %v180
    %618 = vmatprep.subr.mxu0 0.0
    %619 = vmatpush1.msra.mxu0 %v179
    %620 = vmatprep.subr.mxu0 0.0
    %621 = vmatpush1.msra.mxu0 %v178
    %622 = vmatprep.subr.mxu0 0.0
    %623 = vmatpush2.msra.mxu0 0.0
    %624 = vmatprep.subr.mxu0 0.0
    %625 = vmatpush2.msra.mxu0 0.0
    %626 = vmatprep.subr.mxu0 0.0
    %627 = vmatpush2.msra.mxu0 0.0
    %628 = vmatprep.subr.mxu0 0.0
    %629 = vmatpush2.msra.mxu0 0.0
    %630 = vmatprep.subr.mxu0 0.0
    %631 = vmatpush2.msra.mxu0 0.0
    %632 = vmatprep.subr.mxu0 0.0
    %633 = vmatpush2.msra.mxu0 0.0
    %634 = vmatprep.subr.mxu0 0.0
    %635 = vmatpush2.msra.mxu0 0.0
    %636 = vmatprep.subr.mxu0 0.0
    %637 = vmatpush2.msra.mxu0 0.0
    %638 = vmatprep.subr.mxu0 0.0
    %639 = vmatpush2.msra.mxu0 0.0
    %640 = vmatprep.subr.mxu0 0.0
    %641 = vmatpush2.msra.mxu0 0.0
    %642 = vmatprep.subr.mxu0 0.0
    %643 = vmatpush2.msra.mxu0 0.0
    %644 = vmatprep.subr.mxu0 0.0
    %645 = vmatpush2.msra.mxu0 0.0
    %646 = vmatprep.subr.mxu0 0.0
    %647 = vmatpush2.msra.mxu0 0.0
    %648 = vmatprep.subr.mxu0 0.0
    %649 = vmatpush2.msra.mxu0 0.0
    %650 = vmatprep.subr.mxu0 0.0
    %651 = vmatpush2.msra.mxu0 0.0
    %652 = vmatprep.subr.mxu0 0.0
    %653 = vmatpush2.msra.mxu0 0.0
    %654 = vmatprep.mubr.f32.mxu0 0.0
    %655 = vmatmul.mubr.f32.gmra.mxu0 %v588
    %v656 = vpop.f32.mrf.mxu0
    %v657 = vadd.f32 0.0, %v656
    %v658 = vpop.f32.mrf.mxu0
    %659 = vdwg.mxu0
    %v660 = vadd.f32 %v584, %v657
    %v661 = vmul.f32 %v660, %v187
    %v662 = vtanh.pop %v661
    %v663 = vmul.f32 %v662, %v187
    %v664 = vadd.f32 %v663, %v188
    %v665 = vmul.f32 %v664, %v576
    %667 = vrot.lane.b32.xlu0 %v664, 64
    %v668 = vpop.permute.xlu0 %667
    %v670 = vmul.f32 %v664, %v668
    %672 = vrot.lane.b32.xlu0 %v670, 32
    %v673 = vpop.permute.xlu0 %672
    %v675 = vadd.f32 %v665, %v673
    %v676 = vtanh.pop %v675
    %678 = vrot.lane.b32.xlu0 %v676, 64
    %v679 = vpop.permute.xlu0 %678
    %v681 = vmul.f32 %v664, %v679
    %s682 = scalar_lea.vmem [#allocation2], 40
    %v683 = vld [vmem:[%s682] sm:$0xff]
    %685 = vrot.lane.b32.xlu0 %v681, 32
    %v686 = vpop.permute.xlu0 %685
    %v687 = vsel %vm190, %v686, 0
    %689 = vmatprep.subr.mxu0 0.0
    %690 = vmatpush1.msra.mxu0 0.0
    %691 = vmatprep.subr.mxu0 0.0
    %692 = vmatpush1.msra.mxu0 0.0
    %693 = vmatprep.subr.mxu0 0.0
    %694 = vmatpush1.msra.mxu0 0.0
    %695 = vmatprep.subr.mxu0 0.0
    %696 = vmatpush1.msra.mxu0 0.0
    %697 = vmatprep.subr.mxu0 0.0
    %698 = vmatpush1.msra.mxu0 0.0
    %699 = vmatprep.subr.mxu0 0.0
    %700 = vmatpush1.msra.mxu0 0.0
    %701 = vmatprep.subr.mxu0 0.0
    %702 = vmatpush1.msra.mxu0 0.0
    %703 = vmatprep.subr.mxu0 0.0
    %704 = vmatpush1.msra.mxu0 0.0
    %705 = vmatprep.subr.mxu0 0.0
    %706 = vmatpush1.msra.mxu0 0.0
    %707 = vmatprep.subr.mxu0 0.0
    %708 = vmatpush1.msra.mxu0 0.0
    %709 = vmatprep.subr.mxu0 0.0
    %710 = vmatpush1.msra.mxu0 0.0
    %711 = vmatprep.subr.mxu0 0.0
    %712 = vmatpush1.msra.mxu0 0.0
    %713 = vmatprep.subr.mxu0 0.0
    %714 = vmatpush1.msra.mxu0 %v181
    %715 = vmatprep.subr.mxu0 0.0
    %716 = vmatpush1.msra.mxu0 %v180
    %717 = vmatprep.subr.mxu0 0.0
    %718 = vmatpush1.msra.mxu0 %v179
    %719 = vmatprep.subr.mxu0 0.0
    %720 = vmatpush1.msra.mxu0 %v178
    %721 = vmatprep.subr.mxu0 0.0
    %722 = vmatpush2.msra.mxu0 0.0
    %723 = vmatprep.subr.mxu0 0.0
    %724 = vmatpush2.msra.mxu0 0.0
    %725 = vmatprep.subr.mxu0 0.0
    %726 = vmatpush2.msra.mxu0 0.0
    %727 = vmatprep.subr.mxu0 0.0
    %728 = vmatpush2.msra.mxu0 0.0
    %729 = vmatprep.subr.mxu0 0.0
    %730 = vmatpush2.msra.mxu0 0.0
    %731 = vmatprep.subr.mxu0 0.0
    %732 = vmatpush2.msra.mxu0 0.0
    %733 = vmatprep.subr.mxu0 0.0
    %734 = vmatpush2.msra.mxu0 0.0
    %735 = vmatprep.subr.mxu0 0.0
    %736 = vmatpush2.msra.mxu0 0.0
    %737 = vmatprep.subr.mxu0 0.0
    %738 = vmatpush2.msra.mxu0 0.0
    %739 = vmatprep.subr.mxu0 0.0
    %740 = vmatpush2.msra.mxu0 0.0
    %741 = vmatprep.subr.mxu0 0.0
    %742 = vmatpush2.msra.mxu0 0.0
    %743 = vmatprep.subr.mxu0 0.0
    %744 = vmatpush2.msra.mxu0 0.0
    %745 = vmatprep.subr.mxu0 0.0
    %746 = vmatpush2.msra.mxu0 0.0
    %747 = vmatprep.subr.mxu0 0.0
    %748 = vmatpush2.msra.mxu0 0.0
    %749 = vmatprep.subr.mxu0 0.0
    %750 = vmatpush2.msra.mxu0 0.0
    %751 = vmatprep.subr.mxu0 0.0
    %752 = vmatpush2.msra.mxu0 0.0
    %753 = vmatprep.mubr.f32.mxu0 0.0
    %754 = vmatmul.mubr.f32.gmra.mxu0 %v687
    %v755 = vpop.f32.mrf.mxu0
    %v756 = vadd.f32 0.0, %v755
    %v757 = vpop.f32.mrf.mxu0
    %758 = vdwg.mxu0
    %v759 = vadd.f32 %v683, %v756
    %v760 = vmul.f32 %v759, %v187
    %v761 = vtanh.pop %v760
    %v762 = vmul.f32 %v761, %v187
    %v763 = vadd.f32 %v762, %v188
    %v764 = vmul.f32 %v763, %v675
    %766 = vrot.lane.b32.xlu0 %v763, 64
    %v767 = vpop.permute.xlu0 %766
    %v769 = vmul.f32 %v763, %v767
    %771 = vrot.lane.b32.xlu0 %v769, 32
    %v772 = vpop.permute.xlu0 %771
    %v774 = vadd.f32 %v764, %v772
    %v775 = vtanh.pop %v774
    %777 = vrot.lane.b32.xlu0 %v775, 64
    %v778 = vpop.permute.xlu0 %777
    %v780 = vmul.f32 %v763, %v778
    %s781 = scalar_lea.vmem [#allocation2], 48
    %v782 = vld [vmem:[%s781] sm:$0xff]
    %784 = vrot.lane.b32.xlu0 %v780, 32
    %v785 = vpop.permute.xlu0 %784
    %v786 = vsel %vm190, %v785, 0
    %788 = vmatprep.subr.mxu0 0.0
    %789 = vmatpush1.msra.mxu0 0.0
    %790 = vmatprep.subr.mxu0 0.0
    %791 = vmatpush1.msra.mxu0 0.0
    %792 = vmatprep.subr.mxu0 0.0
    %793 = vmatpush1.msra.mxu0 0.0
    %794 = vmatprep.subr.mxu0 0.0
    %795 = vmatpush1.msra.mxu0 0.0
    %796 = vmatprep.subr.mxu0 0.0
    %797 = vmatpush1.msra.mxu0 0.0
    %798 = vmatprep.subr.mxu0 0.0
    %799 = vmatpush1.msra.mxu0 0.0
    %800 = vmatprep.subr.mxu0 0.0
    %801 = vmatpush1.msra.mxu0 0.0
    %802 = vmatprep.subr.mxu0 0.0
    %803 = vmatpush1.msra.mxu0 0.0
    %804 = vmatprep.subr.mxu0 0.0
    %805 = vmatpush1.msra.mxu0 0.0
    %806 = vmatprep.subr.mxu0 0.0
    %807 = vmatpush1.msra.mxu0 0.0
    %808 = vmatprep.subr.mxu0 0.0
    %809 = vmatpush1.msra.mxu0 0.0
    %810 = vmatprep.subr.mxu0 0.0
    %811 = vmatpush1.msra.mxu0 0.0
    %812 = vmatprep.subr.mxu0 0.0
    %813 = vmatpush1.msra.mxu0 %v181
    %814 = vmatprep.subr.mxu0 0.0
    %815 = vmatpush1.msra.mxu0 %v180
    %816 = vmatprep.subr.mxu0 0.0
    %817 = vmatpush1.msra.mxu0 %v179
    %818 = vmatprep.subr.mxu0 0.0
    %819 = vmatpush1.msra.mxu0 %v178
    %820 = vmatprep.subr.mxu0 0.0
    %821 = vmatpush2.msra.mxu0 0.0
    %822 = vmatprep.subr.mxu0 0.0
    %823 = vmatpush2.msra.mxu0 0.0
    %824 = vmatprep.subr.mxu0 0.0
    %825 = vmatpush2.msra.mxu0 0.0
    %826 = vmatprep.subr.mxu0 0.0
    %827 = vmatpush2.msra.mxu0 0.0
    %828 = vmatprep.subr.mxu0 0.0
    %829 = vmatpush2.msra.mxu0 0.0
    %830 = vmatprep.subr.mxu0 0.0
    %831 = vmatpush2.msra.mxu0 0.0
    %832 = vmatprep.subr.mxu0 0.0
    %833 = vmatpush2.msra.mxu0 0.0
    %834 = vmatprep.subr.mxu0 0.0
    %835 = vmatpush2.msra.mxu0 0.0
    %836 = vmatprep.subr.mxu0 0.0
    %837 = vmatpush2.msra.mxu0 0.0
    %838 = vmatprep.subr.mxu0 0.0
    %839 = vmatpush2.msra.mxu0 0.0
    %840 = vmatprep.subr.mxu0 0.0
    %841 = vmatpush2.msra.mxu0 0.0
    %842 = vmatprep.subr.mxu0 0.0
    %843 = vmatpush2.msra.mxu0 0.0
    %844 = vmatprep.subr.mxu0 0.0
    %845 = vmatpush2.msra.mxu0 0.0
    %846 = vmatprep.subr.mxu0 0.0
    %847 = vmatpush2.msra.mxu0 0.0
    %848 = vmatprep.subr.mxu0 0.0
    %849 = vmatpush2.msra.mxu0 0.0
    %850 = vmatprep.subr.mxu0 0.0
    %851 = vmatpush2.msra.mxu0 0.0
    %852 = vmatprep.mubr.f32.mxu0 0.0
    %853 = vmatmul.mubr.f32.gmra.mxu0 %v786
    %v854 = vpop.f32.mrf.mxu0
    %v855 = vadd.f32 0.0, %v854
    %v856 = vpop.f32.mrf.mxu0
    %857 = vdwg.mxu0
    %v858 = vadd.f32 %v782, %v855
    %v859 = vmul.f32 %v858, %v187
    %v860 = vtanh.pop %v859
    %v861 = vmul.f32 %v860, %v187
    %v862 = vadd.f32 %v861, %v188
    %v863 = vmul.f32 %v862, %v774
    %865 = vrot.lane.b32.xlu0 %v862, 64
    %v866 = vpop.permute.xlu0 %865
    %v868 = vmul.f32 %v862, %v866
    %870 = vrot.lane.b32.xlu0 %v868, 32
    %v871 = vpop.permute.xlu0 %870
    %v873 = vadd.f32 %v863, %v871
    %v874 = vtanh.pop %v873
    %876 = vrot.lane.b32.xlu0 %v874, 64
    %v877 = vpop.permute.xlu0 %876
    %v879 = vmul.f32 %v862, %v877
    %s880 = scalar_lea.vmem [#allocation2], 56
    %v881 = vld [vmem:[%s880] sm:$0xff]
    %883 = vrot.lane.b32.xlu0 %v879, 32
    %v884 = vpop.permute.xlu0 %883
    %v885 = vsel %vm190, %v884, 0
    %887 = vmatprep.subr.mxu0 0.0
    %888 = vmatpush1.msra.mxu0 0.0
    %889 = vmatprep.subr.mxu0 0.0
    %890 = vmatpush1.msra.mxu0 0.0
    %891 = vmatprep.subr.mxu0 0.0
    %892 = vmatpush1.msra.mxu0 0.0
    %893 = vmatprep.subr.mxu0 0.0
    %894 = vmatpush1.msra.mxu0 0.0
    %895 = vmatprep.subr.mxu0 0.0
    %896 = vmatpush1.msra.mxu0 0.0
    %897 = vmatprep.subr.mxu0 0.0
    %898 = vmatpush1.msra.mxu0 0.0
    %899 = vmatprep.subr.mxu0 0.0
    %900 = vmatpush1.msra.mxu0 0.0
    %901 = vmatprep.subr.mxu0 0.0
    %902 = vmatpush1.msra.mxu0 0.0
    %903 = vmatprep.subr.mxu0 0.0
    %904 = vmatpush1.msra.mxu0 0.0
    %905 = vmatprep.subr.mxu0 0.0
    %906 = vmatpush1.msra.mxu0 0.0
    %907 = vmatprep.subr.mxu0 0.0
    %908 = vmatpush1.msra.mxu0 0.0
    %909 = vmatprep.subr.mxu0 0.0
    %910 = vmatpush1.msra.mxu0 0.0
    %911 = vmatprep.subr.mxu0 0.0
    %912 = vmatpush1.msra.mxu0 %v181
    %913 = vmatprep.subr.mxu0 0.0
    %914 = vmatpush1.msra.mxu0 %v180
    %915 = vmatprep.subr.mxu0 0.0
    %916 = vmatpush1.msra.mxu0 %v179
    %917 = vmatprep.subr.mxu0 0.0
    %918 = vmatpush1.msra.mxu0 %v178
    %919 = vmatprep.subr.mxu0 0.0
    %920 = vmatpush2.msra.mxu0 0.0
    %921 = vmatprep.subr.mxu0 0.0
    %922 = vmatpush2.msra.mxu0 0.0
    %923 = vmatprep.subr.mxu0 0.0
    %924 = vmatpush2.msra.mxu0 0.0
    %925 = vmatprep.subr.mxu0 0.0
    %926 = vmatpush2.msra.mxu0 0.0
    %927 = vmatprep.subr.mxu0 0.0
    %928 = vmatpush2.msra.mxu0 0.0
    %929 = vmatprep.subr.mxu0 0.0
    %930 = vmatpush2.msra.mxu0 0.0
    %931 = vmatprep.subr.mxu0 0.0
    %932 = vmatpush2.msra.mxu0 0.0
    %933 = vmatprep.subr.mxu0 0.0
    %934 = vmatpush2.msra.mxu0 0.0
    %935 = vmatprep.subr.mxu0 0.0
    %936 = vmatpush2.msra.mxu0 0.0
    %937 = vmatprep.subr.mxu0 0.0
    %938 = vmatpush2.msra.mxu0 0.0
    %939 = vmatprep.subr.mxu0 0.0
    %940 = vmatpush2.msra.mxu0 0.0
    %941 = vmatprep.subr.mxu0 0.0
    %942 = vmatpush2.msra.mxu0 0.0
    %943 = vmatprep.subr.mxu0 0.0
    %944 = vmatpush2.msra.mxu0 0.0
    %945 = vmatprep.subr.mxu0 0.0
    %946 = vmatpush2.msra.mxu0 0.0
    %947 = vmatprep.subr.mxu0 0.0
    %948 = vmatpush2.msra.mxu0 0.0
    %949 = vmatprep.subr.mxu0 0.0
    %950 = vmatpush2.msra.mxu0 0.0
    %951 = vmatprep.mubr.f32.mxu0 0.0
    %952 = vmatmul.mubr.f32.gmra.mxu0 %v885
    %v953 = vpop.f32.mrf.mxu0
    %v954 = vadd.f32 0.0, %v953
    %v955 = vpop.f32.mrf.mxu0
    %956 = vdwg.mxu0
    %v957 = vadd.f32 %v881, %v954
    %v958 = vmul.f32 %v957, %v187
    %v959 = vtanh.pop %v958
    %v960 = vmul.f32 %v959, %v187
    %v961 = vadd.f32 %v960, %v188
    %v962 = vmul.f32 %v961, %v873
    %964 = vrot.lane.b32.xlu0 %v961, 64
    %v965 = vpop.permute.xlu0 %964
    %v967 = vmul.f32 %v961, %v965
    %969 = vrot.lane.b32.xlu0 %v967, 32
    %v970 = vpop.permute.xlu0 %969
    %v972 = vadd.f32 %v962, %v970
    %v973 = vtanh.pop %v972
    %975 = vrot.lane.b32.xlu0 %v973, 64
    %v976 = vpop.permute.xlu0 %975
    %v978 = vmul.f32 %v961, %v976
    %v979 = vld [vmem:[%s4] sm:$0xff]
    %v980 = vld [vmem:[%s4 + $0x8] sm:$0xff]
    %v981 = vld [vmem:[%s4 + $0x10] sm:$0xff]
    %v982 = vld [vmem:[%s4 + $0x18] sm:$0xff]
    %v983 = vld [vmem:[%s5] sm:$0x1]
    %v985 = vlaneseq
    %v986 = vshrl.u32 %v985, 7
    %v987 = vsub.s32 0, %v986
    %v988 = vrot.slane %v983, %v987
    %991 = vrot.lane.b32.xlu0 %v978, 32
    %v992 = vpop.permute.xlu0 %991
    %v993 = vsel %vm190, %v992, 0
    %995 = vmatprep.subr.mxu0 0.0
    %996 = vmatpush1.msra.mxu0 0.0
    %997 = vmatprep.subr.mxu0 0.0
    %998 = vmatpush1.msra.mxu0 0.0
    %999 = vmatprep.subr.mxu0 0.0
    %1000 = vmatpush1.msra.mxu0 0.0
    %1001 = vmatprep.subr.mxu0 0.0
    %1002 = vmatpush1.msra.mxu0 0.0
    %1003 = vmatprep.subr.mxu0 0.0
    %1004 = vmatpush1.msra.mxu0 0.0
    %1005 = vmatprep.subr.mxu0 0.0
    %1006 = vmatpush1.msra.mxu0 0.0
    %1007 = vmatprep.subr.mxu0 0.0
    %1008 = vmatpush1.msra.mxu0 0.0
    %1009 = vmatprep.subr.mxu0 0.0
    %1010 = vmatpush1.msra.mxu0 0.0
    %1011 = vmatprep.subr.mxu0 0.0
    %1012 = vmatpush1.msra.mxu0 0.0
    %1013 = vmatprep.subr.mxu0 0.0
    %1014 = vmatpush1.msra.mxu0 0.0
    %1015 = vmatprep.subr.mxu0 0.0
    %1016 = vmatpush1.msra.mxu0 0.0
    %1017 = vmatprep.subr.mxu0 0.0
    %1018 = vmatpush1.msra.mxu0 0.0
    %1019 = vmatprep.subr.mxu0 0.0
    %1020 = vmatpush1.msra.mxu0 %v982
    %1021 = vmatprep.subr.mxu0 0.0
    %1022 = vmatpush1.msra.mxu0 %v981
    %1023 = vmatprep.subr.mxu0 0.0
    %1024 = vmatpush1.msra.mxu0 %v980
    %1025 = vmatprep.subr.mxu0 0.0
    %1026 = vmatpush1.msra.mxu0 %v979
    %1027 = vmatprep.subr.mxu0 0.0
    %1028 = vmatpush2.msra.mxu0 0.0
    %1029 = vmatprep.subr.mxu0 0.0
    %1030 = vmatpush2.msra.mxu0 0.0
    %1031 = vmatprep.subr.mxu0 0.0
    %1032 = vmatpush2.msra.mxu0 0.0
    %1033 = vmatprep.subr.mxu0 0.0
    %1034 = vmatpush2.msra.mxu0 0.0
    %1035 = vmatprep.subr.mxu0 0.0
    %1036 = vmatpush2.msra.mxu0 0.0
    %1037 = vmatprep.subr.mxu0 0.0
    %1038 = vmatpush2.msra.mxu0 0.0
    %1039 = vmatprep.subr.mxu0 0.0
    %1040 = vmatpush2.msra.mxu0 0.0
    %1041 = vmatprep.subr.mxu0 0.0
    %1042 = vmatpush2.msra.mxu0 0.0
    %1043 = vmatprep.subr.mxu0 0.0
    %1044 = vmatpush2.msra.mxu0 0.0
    %1045 = vmatprep.subr.mxu0 0.0
    %1046 = vmatpush2.msra.mxu0 0.0
    %1047 = vmatprep.subr.mxu0 0.0
    %1048 = vmatpush2.msra.mxu0 0.0
    %1049 = vmatprep.subr.mxu0 0.0
    %1050 = vmatpush2.msra.mxu0 0.0
    %1051 = vmatprep.subr.mxu0 0.0
    %1052 = vmatpush2.msra.mxu0 0.0
    %1053 = vmatprep.subr.mxu0 0.0
    %1054 = vmatpush2.msra.mxu0 0.0
    %1055 = vmatprep.subr.mxu0 0.0
    %1056 = vmatpush2.msra.mxu0 0.0
    %1057 = vmatprep.subr.mxu0 0.0
    %1058 = vmatpush2.msra.mxu0 0.0
    %1059 = vmatprep.mubr.f32.mxu0 0.0
    %1060 = vmatmul.mubr.f32.gmra.mxu0 %v993
    %v1061 = vpop.f32.mrf.mxu0
    %v1062 = vadd.f32 %v988, %v1061
    %v1063 = vpop.f32.mrf.mxu0
    %1064 = vdwg.mxu0
    %vm1065 = vcmask 130048
    %1066 = vst.msk [vmem:[#allocation3] sm:$0xff] %vm1065, %v1062
    // Predicated region
    $region26: #{tpu_custom_call.1} parent=1 // pred_check
      _
    $region27: #{tpu_custom_call.1} parent=1 // pred_check_branch
      %1068 = sbr.rel (0) target = $region29
    $region28: #{tpu_custom_call.1} parent=1 // pred_region
      %s1070 = ssub.s32 128, 128
      %1071 = vsyncadd [#allocation4], %s1070
      %s1073 = sshll.u32 [#allocation3], 4
      %s1074 = int_to_ptr.vmem [resolvable:$true] %s1073
      %1076 = dma.vmem_to_hbm [thread:$0]  %s1074, 128, %s6, [#allocation4]
    $region29: #{tpu_custom_call.1} parent=1 // pred_fallthru
      _
    // Predicated region
    $region30: #{tpu_custom_call.1} parent=1 // pred_check
      _
    $region31: #{tpu_custom_call.1} parent=1 // pred_check_branch
      %1078 = sbr.rel (0) target = $region33
    $region32: #{tpu_custom_call.1} parent=1 // pred_region
      %1079 = dma.done [#allocation4], 128
    $region33: #{tpu_custom_call.1} parent=1 // pred_fallthru
      _
    %1080 = vsyncpa [#allocation4], 1

</llo_original>
